<compile_context>
chip_gen: v6e
topology: v6e:2x2x1
jax: 0.10.0
libtpu: 0.0.40
codegen_flags: <defaults>
</compile_context>

<pallas_src>
import functools

import jax
import jax.numpy as jnp
from jax.experimental import pallas as pl
from jax.experimental.pallas import tpu as pltpu


def _conv_bn_kernel(w_ref, scale_ref, shift_ref, xp_ref, xc_ref, xn_ref, o_ref,
                    *, k, pad, apply_tanh):
    """One (batch, L-tile) block: fused Conv1d + folded BatchNorm (+ tanh).

    w_ref:     (C_out, K*C_in)   conv weight, tap-major (r = t*C_in + c)
    scale_ref: (C_out, 1)        folded BN scale                  (f32)
    shift_ref: (C_out, 1)        folded BN shift (incl. conv bias)(f32)
    xp_ref:    (1, C_in, TL)     previous L tile (halo source, clamped)
    xc_ref:    (1, C_in, TL)     current  L tile
    xn_ref:    (1, C_in, TL)     next     L tile (halo source, clamped)
    o_ref:     (1, C_out, TL)
    """
    l = pl.program_id(1)
    nl = pl.num_programs(1)
    tl = o_ref.shape[-1]

    cur = xc_ref[0]                      # (C_in, TL)
    xdt = cur.dtype

    pieces = []
    if pad > 0:
        # Last `pad` columns of the previous tile; zero at sequence start.
        left = xp_ref[0, :, tl - pad:] * (l > 0).astype(xdt)
        pieces.append(left)
    pieces.append(cur)
    rpad = k - 1 - pad
    if rpad > 0:
        # First `rpad` columns of the next tile; zero at sequence end.
        right = xn_ref[0, :, :rpad] * (l < nl - 1).astype(xdt)
        pieces.append(right)

    window = jnp.concatenate(pieces, axis=-1) if len(pieces) > 1 else cur
    # window: (C_in, TL + K - 1)

    # im2col in VMEM: rows ordered tap-major then channel, matching w_ref.
    if k > 1:
        cols = jnp.concatenate([window[:, t:t + tl] for t in range(k)], axis=0)
    else:
        cols = window
    # cols: (K*C_in, TL)

    # Single fat MXU matmul, f32 accumulation.
    y = jnp.dot(w_ref[...], cols.astype(w_ref.dtype),
                preferred_element_type=jnp.float32)
    y = y * scale_ref[...] + shift_ref[...]
    if apply_tanh:
        y = jnp.tanh(y)
    o_ref[0] = y.astype(o_ref.dtype)


def _pick_l_tile(L, max_tl=512):
    """Largest 128-multiple tile (<= max_tl) that divides L, else full L."""
    for tl in (max_tl, 256, 128):
        if tl <= L and L % tl == 0:
            return tl
    return L  # full-extent block (always a legal BlockSpec)


def conv1d_bn_pallas(x, w, scale, shift, *, apply_tanh, out_dtype=None,
                     matmul_dtype=jnp.bfloat16, max_l_tile=512,
                     vmem_limit_bytes=48 * 1024 * 1024):
    """x: (N, C_in, L), w: (C_out, C_in, K), scale/shift: (C_out, 1) f32."""
    N, C_in, L = x.shape
    C_out, _, K = w.shape
    # PyTorch padding = (K-1)//2 only gives 'same' length for odd K.
    assert K % 2 == 1, "PostNet kernel_size must be odd to match PyTorch output length"
    pad = (K - 1) // 2

    TL = _pick_l_tile(L, max_l_tile)
    assert pad <= TL, "L tile must be at least the halo width"
    num_l = L // TL
    out_dtype = out_dtype if out_dtype is not None else x.dtype

    # Dense (C_out, K*C_in) weight, tap-major: w2[o, t*C_in + c] = w[o, c, t].
    w2 = jnp.transpose(w, (0, 2, 1)).reshape(C_out, K * C_in).astype(matmul_dtype)
    scale = scale.astype(jnp.float32)
    shift = shift.astype(jnp.float32)

    kernel = functools.partial(_conv_bn_kernel, k=K, pad=pad,
                               apply_tanh=apply_tanh)

    return pl.pallas_call(
        kernel,
        out_shape=jax.ShapeDtypeStruct((N, C_out, L), out_dtype),
        grid=(N, num_l),
        in_specs=[
            pl.BlockSpec((C_out, K * C_in), lambda n, l: (0, 0)),
            pl.BlockSpec((C_out, 1), lambda n, l: (0, 0)),
            pl.BlockSpec((C_out, 1), lambda n, l: (0, 0)),
            # prev / cur / next L tiles of x (halo assembled in-kernel).
            pl.BlockSpec((1, C_in, TL),
                         lambda n, l: (n, 0, jnp.maximum(l - 1, 0))),
            pl.BlockSpec((1, C_in, TL), lambda n, l: (n, 0, l)),
            pl.BlockSpec((1, C_in, TL),
                         lambda n, l: (n, 0, jnp.minimum(l + 1, num_l - 1))),
        ],
        out_specs=pl.BlockSpec((1, C_out, TL), lambda n, l: (n, 0, l)),
        compiler_params=pltpu.CompilerParams(
            dimension_semantics=("parallel", "parallel"),
            vmem_limit_bytes=vmem_limit_bytes,
        ),
    )(w2, scale, shift, x, x, x)


def make_postnet_params(key, mel_bins, post_net_channels, kernel_size,
                        num_layers=3):
    """Deterministic synthetic parameters; BN folded into (scale, shift)."""
    assert num_layers > 2
    eps = 1e-5
    dims = ([(mel_bins, post_net_channels)]
            + [(post_net_channels, post_net_channels)] * (num_layers - 2)
            + [(post_net_channels, mel_bins)])
    params = []
    for (c_in, c_out) in dims:
        key, kw, kb, kg, kbe, km, kv = jax.random.split(key, 7)
        w = jax.random.normal(kw, (c_out, c_in, kernel_size), jnp.float32) * 0.1
        b = jax.random.normal(kb, (c_out,), jnp.float32) * 0.1
        gamma = 1.0 + 0.1 * jax.random.normal(kg, (c_out,), jnp.float32)
        beta = 0.1 * jax.random.normal(kbe, (c_out,), jnp.float32)
        mean = 0.1 * jax.random.normal(km, (c_out,), jnp.float32)
        var = jax.nn.softplus(jax.random.normal(kv, (c_out,), jnp.float32)) + 0.5
        scale = gamma / jnp.sqrt(var + eps)
        shift = beta + scale * (b - mean)
        params.append((w, scale[:, None], shift[:, None]))
    return params


def postnet_forward(x, params, *, use_bf16=True):
    """x: (N, mel_bins, L) -> (N, mel_bins, L) f32.  Dropout = identity (eval)."""
    n_layers = len(params)
    mm_dtype = jnp.bfloat16 if use_bf16 else jnp.float32
    for i, (w, scale, shift) in enumerate(params):
        last = i == n_layers - 1
        # Intermediate activations stored bf16 (halves inter-layer HBM traffic);
        # final output stays f32.
        out_dtype = jnp.float32 if last else (jnp.bfloat16 if use_bf16
                                              else jnp.float32)
        x = conv1d_bn_pallas(x, w, scale, shift,
                             apply_tanh=not last,
                             out_dtype=out_dtype,
                             matmul_dtype=mm_dtype)
    return x


if __name__ == "__main__":
    batch = 2
    mel_bins = 8
    post_net_channels = 16
    seq_len = 16
    kernel_size = 5
    num_layers = 3

    key = jax.random.PRNGKey(0)
    key, kx = jax.random.split(key)
    x = jax.random.normal(kx, (batch, mel_bins, seq_len), jnp.float32)

    params = make_postnet_params(key, mel_bins, post_net_channels,
                                 kernel_size, num_layers)

    out = postnet_forward(x, params)
    jax.block_until_ready(out)
    assert out.shape == (batch, mel_bins, seq_len)
    assert out.dtype == jnp.float32
    print("KERNEL_OK")
</pallas_src>

<mosaic_0001>
module attributes {stable_mosaic.version = 11 : i64} {
  func.func @_conv_bn_kernel(%arg0: i32, %arg1: i32, %arg2: memref<16x40xbf16, #tpu.memory_space<vmem>>, %arg3: memref<16x1xf32, #tpu.memory_space<vmem>>, %arg4: memref<16x1xf32, #tpu.memory_space<vmem>>, %arg5: memref<1x8x16xf32, #tpu.memory_space<vmem>>, %arg6: memref<1x8x16xf32, #tpu.memory_space<vmem>>, %arg7: memref<1x8x16xf32, #tpu.memory_space<vmem>>, %arg8: memref<1x16x16xbf16, #tpu.memory_space<vmem>>) attributes {dimension_semantics = [#tpu.dimension_semantics<parallel>, #tpu.dimension_semantics<parallel>], iteration_bounds = array<i64: 2, 1>, scalar_prefetch = 0 : i64, scratch_operands = 0 : i64, tpu.core_type = #tpu.core_type<tc>, window_params = [{pipeline_mode = #tpu.pipeline_mode<synchronous>, transform_indices = @transform_0, window_bounds = array<i64: 16, 40>}, {pipeline_mode = #tpu.pipeline_mode<synchronous>, transform_indices = @transform_1, window_bounds = array<i64: 16, 1>}, {pipeline_mode = #tpu.pipeline_mode<synchronous>, transform_indices = @transform_2, window_bounds = array<i64: 16, 1>}, {transform_indices = @transform_3, window_bounds = array<i64: 1, 8, 16>}, {transform_indices = @transform_4, window_bounds = array<i64: 1, 8, 16>}, {transform_indices = @transform_5, window_bounds = array<i64: 1, 8, 16>}, {transform_indices = @transform_6, window_bounds = array<i64: 1, 16, 16>}]} {
    %c0 = arith.constant 0 : index
    %c0_0 = arith.constant 0 : index
    %c0_1 = arith.constant 0 : index
    %0 = vector.load %arg6[%c0, %c0_0, %c0_1] : memref<1x8x16xf32, #tpu.memory_space<vmem>>, vector<1x8x16xf32>
    %1 = vector.shape_cast %0 : vector<1x8x16xf32> to vector<8x16xf32>
    %c0_2 = arith.constant 0 : index
    %c0_3 = arith.constant 0 : index
    %c14 = arith.constant 14 : index
    %2 = vector.load %arg5[%c0_2, %c0_3, %c14] : memref<1x8x16xf32, #tpu.memory_space<vmem>>, vector<1x8x2xf32>
    %3 = vector.shape_cast %2 : vector<1x8x2xf32> to vector<8x2xf32>
    %c0_i32 = arith.constant 0 : i32
    %4 = arith.cmpi sgt, %arg1, %c0_i32 : i32
    %5 = arith.extui %4 : i1 to i32
    %6 = arith.sitofp %5 : i32 to f32
    %7 = vector.broadcast %6 : f32 to vector<8x2xf32>
    %8 = arith.mulf %3, %7 : vector<8x2xf32>
    %c0_4 = arith.constant 0 : index
    %c0_5 = arith.constant 0 : index
    %c0_6 = arith.constant 0 : index
    %9 = vector.load %arg7[%c0_4, %c0_5, %c0_6] : memref<1x8x16xf32, #tpu.memory_space<vmem>>, vector<1x8x2xf32>
    %10 = vector.shape_cast %9 : vector<1x8x2xf32> to vector<8x2xf32>
    %c0_i32_7 = arith.constant 0 : i32
    %11 = arith.cmpi slt, %arg1, %c0_i32_7 : i32
    %12 = arith.extui %11 : i1 to i32
    %13 = arith.sitofp %12 : i32 to f32
    %14 = vector.broadcast %13 : f32 to vector<8x2xf32>
    %15 = arith.mulf %10, %14 : vector<8x2xf32>
    %16 = tpu.concatenate %8, %1, %15 in 1 : vector<8x2xf32>, vector<8x16xf32>, vector<8x2xf32> -> vector<8x20xf32>
    %17 = vector.extract_strided_slice %16 {offsets = [0, 0], sizes = [8, 16], strides = [1, 1]} : vector<8x20xf32> to vector<8x16xf32>
    %18 = vector.extract_strided_slice %16 {offsets = [0, 1], sizes = [8, 16], strides = [1, 1]} : vector<8x20xf32> to vector<8x16xf32>
    %19 = vector.extract_strided_slice %16 {offsets = [0, 2], sizes = [8, 16], strides = [1, 1]} : vector<8x20xf32> to vector<8x16xf32>
    %20 = vector.extract_strided_slice %16 {offsets = [0, 3], sizes = [8, 16], strides = [1, 1]} : vector<8x20xf32> to vector<8x16xf32>
    %21 = vector.extract_strided_slice %16 {offsets = [0, 4], sizes = [8, 16], strides = [1, 1]} : vector<8x20xf32> to vector<8x16xf32>
    %22 = tpu.concatenate %17, %18, %19, %20, %21 in 0 : vector<8x16xf32>, vector<8x16xf32>, vector<8x16xf32>, vector<8x16xf32>, vector<8x16xf32> -> vector<40x16xf32>
    %c0_8 = arith.constant 0 : index
    %c0_9 = arith.constant 0 : index
    %23 = vector.load %arg2[%c0_8, %c0_9] : memref<16x40xbf16, #tpu.memory_space<vmem>>, vector<16x40xbf16>
    %24 = arith.truncf %22 : vector<40x16xf32> to vector<40x16xbf16>
    %cst = arith.constant dense<0.000000e+00> : vector<16x16xf32>
    %25 = tpu.matmul %23, %24, %cst {dimension_numbers = #tpu.dot_dimension_numbers<[1], [0], [0], [1], [0, 0, 1, 1], [], []>} : vector<16x40xbf16>, vector<40x16xbf16>, vector<16x16xf32> -> vector<16x16xf32>
    %c0_10 = arith.constant 0 : index
    %c0_11 = arith.constant 0 : index
    %26 = vector.load %arg3[%c0_10, %c0_11] : memref<16x1xf32, #tpu.memory_space<vmem>>, vector<16x1xf32>
    %27 = vector.broadcast %26 : vector<16x1xf32> to vector<16x16xf32>
    %28 = arith.mulf %25, %27 : vector<16x16xf32>
    %c0_12 = arith.constant 0 : index
    %c0_13 = arith.constant 0 : index
    %29 = vector.load %arg4[%c0_12, %c0_13] : memref<16x1xf32, #tpu.memory_space<vmem>>, vector<16x1xf32>
    %30 = vector.broadcast %29 : vector<16x1xf32> to vector<16x16xf32>
    %31 = arith.addf %28, %30 : vector<16x16xf32>
    %32 = math.tanh %31 : vector<16x16xf32>
    %33 = arith.truncf %32 : vector<16x16xf32> to vector<16x16xbf16>
    %c0_14 = arith.constant 0 : index
    %c0_15 = arith.constant 0 : index
    %c0_16 = arith.constant 0 : index
    %34 = vector.load %arg8[%c0_14, %c0_15, %c0_16] : memref<1x16x16xbf16, #tpu.memory_space<vmem>>, vector<1x16x16xbf16>
    %35 = vector.shape_cast %34 : vector<1x16x16xbf16> to vector<16x16xbf16>
    %36 = vector.shape_cast %33 : vector<16x16xbf16> to vector<1x16x16xbf16>
    tpu.vector_store %arg8[%c0_14, %c0_15, %c0_16], %36 {strides = array<i32>} : memref<1x16x16xbf16, #tpu.memory_space<vmem>>, vector<1x16x16xbf16>,
    return
  }
  func.func @transform_0(%arg0: i32, %arg1: i32) -> (i32, i32) {
    %c0_i32 = arith.constant 0 : i32
    %c0_i32_0 = arith.constant 0 : i32
    %c0_i32_1 = arith.constant 0 : i32
    return %c0_i32, %c0_i32_0 : i32, i32
  }
  func.func @transform_1(%arg0: i32, %arg1: i32) -> (i32, i32) {
    %c0_i32 = arith.constant 0 : i32
    %c0_i32_0 = arith.constant 0 : i32
    %c0_i32_1 = arith.constant 0 : i32
    return %c0_i32, %c0_i32_0 : i32, i32
  }
  func.func @transform_2(%arg0: i32, %arg1: i32) -> (i32, i32) {
    %c0_i32 = arith.constant 0 : i32
    %c0_i32_0 = arith.constant 0 : i32
    %c0_i32_1 = arith.constant 0 : i32
    return %c0_i32, %c0_i32_0 : i32, i32
  }
  func.func @transform_3(%arg0: i32, %arg1: i32) -> (i32, i32, i32) {
    %c1_i32 = arith.constant 1 : i32
    %0 = arith.subi %arg1, %c1_i32 : i32
    %c0_i32 = arith.constant 0 : i32
    %1 = arith.maxsi %0, %c0_i32 : i32
    %c0_i32_0 = arith.constant 0 : i32
    %c0_i32_1 = arith.constant 0 : i32
    return %arg0, %c0_i32_0, %1 : i32, i32, i32
  }
  func.func @transform_4(%arg0: i32, %arg1: i32) -> (i32, i32, i32) {
    %c0_i32 = arith.constant 0 : i32
    %c0_i32_0 = arith.constant 0 : i32
    return %arg0, %c0_i32, %arg1 : i32, i32, i32
  }
  func.func @transform_5(%arg0: i32, %arg1: i32) -> (i32, i32, i32) {
    %c1_i32 = arith.constant 1 : i32
    %0 = arith.addi %arg1, %c1_i32 : i32
    %c0_i32 = arith.constant 0 : i32
    %1 = arith.minsi %0, %c0_i32 : i32
    %c0_i32_0 = arith.constant 0 : i32
    %c0_i32_1 = arith.constant 0 : i32
    return %arg0, %c0_i32_0, %1 : i32, i32, i32
  }
  func.func @transform_6(%arg0: i32, %arg1: i32) -> (i32, i32, i32) {
    %c0_i32 = arith.constant 0 : i32
    %c0_i32_0 = arith.constant 0 : i32
    return %arg0, %c0_i32, %arg1 : i32, i32, i32
  }
}

</mosaic_0001>

<llo_original>
// kernel: tpu_custom_call.1
$region0: #{tpu_custom_call.1}
  #allocation0 [shape = 'u32[]', space=smem, size = 0x4, offset = 0x4, fixed_abs, tag = 'smem constant byte address 0x4 - core index']
  #allocation1 [shape = 'u32[144,128]{1,0:T(1,128)}', space=vmem, size = 0x12000, scoped, tag = 'internal scratch']
  %s0 = inlined_call_operand.hbm [shape: bf16[16,40], index: 0, kind: input, shape index: {}]
  %s1 = inlined_call_operand.vmem [shape: f32[16,1], index: 1, kind: input, shape index: {}]
  %s2 = inlined_call_operand.vmem [shape: f32[16,1], index: 2, kind: input, shape index: {}]
  %s3 = inlined_call_operand.vmem [shape: f32[2,8,16], index: 3, kind: input, shape index: {}]
  %s4 = inlined_call_operand.vmem [shape: f32[2,8,16], index: 4, kind: input, shape index: {}]
  %s5 = inlined_call_operand.hbm [shape: f32[2,8,16], index: 5, kind: input, shape index: {}]
  %s6 = inlined_call_operand.hbm [shape: bf16[2,16,16], index: 6, kind: output, shape index: {}]
  %s7 = sld [smem:[#allocation0]]
  $region65: #{tpu_custom_call.1} parent=0
    _
  %s9 = ssub.s32 1, %s7
  %s10 = scalar_select 0, %s9, %s7
  $region1: #{tpu_custom_call.1} parent=0
    #allocation2 [shape = 'u8[4096]{0}', space=vmem, size = 0x1000, scoped, tag = 'input window, operand 0, single buffered']
    #allocation3 [shape = 's32[2]{0}', space=sflag, size = 0x8, scoped, tag = 'scoped memory for tpu_custom_call.1']
    #allocation4 [shape = 's32[2]{0}', space=sflag, size = 0x8, scoped, tag = 'scoped memory for tpu_custom_call.1']
    #allocation5 [shape = 'u8[8192]{0}', space=vmem, size = 0x2000, scoped, tag = 'input window, operand 5']
    #allocation6 [shape = 's32[2]{0}', space=sflag, size = 0x8, scoped, tag = 'scoped memory for tpu_custom_call.1']
    #allocation7 [shape = 'u8[8192]{0}', space=vmem, size = 0x2000, scoped, tag = 'output window, operand 0']
    %11 = vsyncpa [#allocation3], 0
    %12 = vsyncpa [#allocation6], 0
    %s13 = scalar_lea.sflag [#allocation6], 1
    %14 = vsyncpa %s13, 0
    %15 = vsyncpa [#allocation4], 0
    %s16 = scalar_lea.sflag [#allocation4], 1
    %17 = vsyncpa %s16, 0
    loop: start=0, step=1, limit=4
    $region2: #{tpu_custom_call.1} parent=1 // loop_pre_header
      _
    $region3: #{tpu_custom_call.1} parent=1 // loop_header
      %s19 = sphi 0, %s23
      %p20 = scmp.ge.s32.totalorder %s19, 4
      %s26 = sphi 0, %s38
      %s27 = sphi 0, %s34
      %s28 = sphi 0, %s26
      %s29 = sphi 0, %s27
      %s30 = sphi 0, %s28
      %s31 = sphi 0, %s29
      %s39 = sphi 0, %s39
      %s41 = sphi 0, %s39
      %s42 = sphi 0, %s41
      %s56 = sphi 0, %s42
      %s60 = sphi 0, %s60
      %s62 = sphi 0, %s60
      %s63 = sphi 0, %s62
      %s77 = sphi 0, %s63
      %s81 = sphi 0, %s81
      %s83 = sphi 0, %s81
      %s84 = sphi 0, %s83
      %s98 = sphi 0, %s84
      %s112 = sphi 0, %s114
      %s115 = sphi 0, %s112
      %s116 = sphi 0, %s115
      %s132 = sphi 0, %s116
      %s140 = sphi 0, %s142
      %s143 = sphi 0, %s140
      %s144 = sphi 0, %s143
      %s160 = sphi 0, %s144
      %s174 = sphi 0, %s176
      %s177 = sphi 0, %s174
      %s178 = sphi 0, %s177
      %s194 = sphi 0, %s178
      %s202 = sphi 0, %s204
      %s205 = sphi 0, %s202
      %s206 = sphi 0, %s205
      %s222 = sphi 0, %s206
    $region4: #{tpu_custom_call.1} parent=1 // loop_header_branch
      %22 = sbr.rel (%p20) target = $region8
    $region5: #{tpu_custom_call.1} parent=1 // loop_body
      %s24 = ssub.s32 %s19, 1
      %s25 = ssub.s32 %s19, 2
      %s32 = sadd.s32 1, %s27
      %p33 = scmp.ge.s32.totalorder %s32, 1
      %s34 = scalar_select %p33, 0, %s32
      %s35 = sadd.s32 1, %s26
      %s36 = scalar_select %p33, %s35, %s26
      %p37 = scmp.ge.s32.totalorder %s36, 2
      %s38 = scalar_select %p37, 0, %s36
      %s40 = sadd.s32 %s39, 1
      %p43 = scmp.eq.s32.totalorder %s19, 1
      %p44 = scmp.ne.s32.totalorder %s39, %s41
      %p45 = scmp.eq.s32.totalorder %s19, 0
      %p46 = por %p44, %p45
      %p47 = scmp.ne.s32.totalorder %s39, %s41
      %p48 = scmp.eq.s32.totalorder %s24, 1
      %p49 = por %p47, %p48
      %p50 = scmp.ne.s32.totalorder %s41, %s42
      %p51 = scmp.eq.s32.totalorder %s24, 0
      %p52 = por %p50, %p51
      %p53 = scmp.ne.s32.totalorder %s41, %s42
      %p54 = scmp.eq.s32.totalorder %s25, 1
      %p55 = por %p53, %p54
      %p57 = scmp.ne.s32.totalorder %s42, %s56
      %p58 = scmp.eq.s32.totalorder %s25, 0
      %p59 = por %p57, %p58
      %s61 = sadd.s32 %s60, 1
      %p64 = scmp.eq.s32.totalorder %s19, 1
      %p65 = scmp.ne.s32.totalorder %s60, %s62
      %p66 = scmp.eq.s32.totalorder %s19, 0
      %p67 = por %p65, %p66
      %p68 = scmp.ne.s32.totalorder %s60, %s62
      %p69 = scmp.eq.s32.totalorder %s24, 1
      %p70 = por %p68, %p69
      %p71 = scmp.ne.s32.totalorder %s62, %s63
      %p72 = scmp.eq.s32.totalorder %s24, 0
      %p73 = por %p71, %p72
      %p74 = scmp.ne.s32.totalorder %s62, %s63
      %p75 = scmp.eq.s32.totalorder %s25, 1
      %p76 = por %p74, %p75
      %p78 = scmp.ne.s32.totalorder %s63, %s77
      %p79 = scmp.eq.s32.totalorder %s25, 0
      %p80 = por %p78, %p79
      %s82 = sadd.s32 %s81, 1
      %p85 = scmp.eq.s32.totalorder %s19, 1
      %p86 = scmp.ne.s32.totalorder %s81, %s83
      %p87 = scmp.eq.s32.totalorder %s19, 0
      %p88 = por %p86, %p87
      %p89 = scmp.ne.s32.totalorder %s81, %s83
      %p90 = scmp.eq.s32.totalorder %s24, 1
      %p91 = por %p89, %p90
      %p92 = scmp.ne.s32.totalorder %s83, %s84
      %p93 = scmp.eq.s32.totalorder %s24, 0
      %p94 = por %p92, %p93
      %p95 = scmp.ne.s32.totalorder %s83, %s84
      %p96 = scmp.eq.s32.totalorder %s25, 1
      %p97 = por %p95, %p96
      %p99 = scmp.ne.s32.totalorder %s84, %s98
      %p100 = scmp.eq.s32.totalorder %s25, 0
      %p101 = por %p99, %p100
      %s102 = ssub.s32 %s27, 1
      %p103 = scmp.gt.s32.totalorder %s102, 0
      %s104 = scalar_select %p103, %s102, 0
      %s105 = ssub.s32 %s34, 1
      %p106 = scmp.gt.s32.totalorder %s105, 0
      %s107 = scalar_select %p106, %s105, 0
      %s108 = ssub.s32 %s26, %s38
      %s109 = ssub.s32 %s104, %s107
      %s110 = sor.u32 %s108, %s109
      %p111 = scmp.eq.s32.totalorder %s110, 0
      %s113 = sadd.s32 %s112, 1
      %s114 = scalar_select %p111, %s112, %s113
      %p117 = pneg %p111
      %p118 = scmp.eq.s32.totalorder %s19, 1
      %p119 = por %p117, %p118
      %p120 = scmp.ne.s32.totalorder %s112, %s115
      %p121 = scmp.eq.s32.totalorder %s19, 0
      %p122 = por %p120, %p121
      %p123 = scmp.ne.s32.totalorder %s112, %s115
      %p124 = scmp.eq.s32.totalorder %s24, 1
      %p125 = por %p123, %p124
      %p126 = scmp.ne.s32.totalorder %s115, %s116
      %p127 = scmp.eq.s32.totalorder %s24, 0
      %p128 = por %p126, %p127
      %p129 = scmp.ne.s32.totalorder %s115, %s116
      %p130 = scmp.eq.s32.totalorder %s25, 1
      %p131 = por %p129, %p130
      %p133 = scmp.ne.s32.totalorder %s116, %s132
      %p134 = scmp.eq.s32.totalorder %s25, 0
      %p135 = por %p133, %p134
      %s136 = ssub.s32 %s26, %s38
      %s137 = ssub.s32 %s27, %s34
      %s138 = sor.u32 %s136, %s137
      %p139 = scmp.eq.s32.totalorder %s138, 0
      %s141 = sadd.s32 %s140, 1
      %s142 = scalar_select %p139, %s140, %s141
      %p145 = pneg %p139
      %p146 = scmp.eq.s32.totalorder %s19, 1
      %p147 = por %p145, %p146
      %p148 = scmp.ne.s32.totalorder %s140, %s143
      %p149 = scmp.eq.s32.totalorder %s19, 0
      %p150 = por %p148, %p149
      %p151 = scmp.ne.s32.totalorder %s140, %s143
      %p152 = scmp.eq.s32.totalorder %s24, 1
      %p153 = por %p151, %p152
      %p154 = scmp.ne.s32.totalorder %s143, %s144
      %p155 = scmp.eq.s32.totalorder %s24, 0
      %p156 = por %p154, %p155
      %p157 = scmp.ne.s32.totalorder %s143, %s144
      %p158 = scmp.eq.s32.totalorder %s25, 1
      %p159 = por %p157, %p158
      %p161 = scmp.ne.s32.totalorder %s144, %s160
      %p162 = scmp.eq.s32.totalorder %s25, 0
      %p163 = por %p161, %p162
      %s164 = sadd.s32 %s27, 1
      %p165 = scmp.lt.s32.totalorder %s164, 0
      %s166 = scalar_select %p165, %s164, 0
      %s167 = sadd.s32 %s34, 1
      %p168 = scmp.lt.s32.totalorder %s167, 0
      %s169 = scalar_select %p168, %s167, 0
      %s170 = ssub.s32 %s26, %s38
      %s171 = ssub.s32 %s166, %s169
      %s172 = sor.u32 %s170, %s171
      %p173 = scmp.eq.s32.totalorder %s172, 0
      %s175 = sadd.s32 %s174, 1
      %s176 = scalar_select %p173, %s174, %s175
      %p179 = pneg %p173
      %p180 = scmp.eq.s32.totalorder %s19, 1
      %p181 = por %p179, %p180
      %p182 = scmp.ne.s32.totalorder %s174, %s177
      %p183 = scmp.eq.s32.totalorder %s19, 0
      %p184 = por %p182, %p183
      %p185 = scmp.ne.s32.totalorder %s174, %s177
      %p186 = scmp.eq.s32.totalorder %s24, 1
      %p187 = por %p185, %p186
      %p188 = scmp.ne.s32.totalorder %s177, %s178
      %p189 = scmp.eq.s32.totalorder %s24, 0
      %p190 = por %p188, %p189
      %p191 = scmp.ne.s32.totalorder %s177, %s178
      %p192 = scmp.eq.s32.totalorder %s25, 1
      %p193 = por %p191, %p192
      %p195 = scmp.ne.s32.totalorder %s178, %s194
      %p196 = scmp.eq.s32.totalorder %s25, 0
      %p197 = por %p195, %p196
      %s198 = ssub.s32 %s26, %s38
      %s199 = ssub.s32 %s27, %s34
      %s200 = sor.u32 %s198, %s199
      %p201 = scmp.eq.s32.totalorder %s200, 0
      %s203 = sadd.s32 %s202, 1
      %s204 = scalar_select %p201, %s202, %s203
      %p207 = pneg %p201
      %p208 = scmp.eq.s32.totalorder %s19, 1
      %p209 = por %p207, %p208
      %p210 = scmp.ne.s32.totalorder %s202, %s205
      %p211 = scmp.eq.s32.totalorder %s19, 0
      %p212 = por %p210, %p211
      %p213 = scmp.ne.s32.totalorder %s202, %s205
      %p214 = scmp.eq.s32.totalorder %s24, 1
      %p215 = por %p213, %p214
      %p216 = scmp.ne.s32.totalorder %s205, %s206
      %p217 = scmp.eq.s32.totalorder %s24, 0
      %p218 = por %p216, %p217
      %p219 = scmp.ne.s32.totalorder %s205, %s206
      %p220 = scmp.eq.s32.totalorder %s25, 1
      %p221 = por %p219, %p220
      %p223 = scmp.ne.s32.totalorder %s206, %s222
      %p224 = scmp.eq.s32.totalorder %s25, 0
      %p225 = por %p223, %p224
      %p226 = scmp.le.s32.totalorder 1, %s19
      %p227 = scmp.lt.s32.totalorder %s19, 3
      %p228 = pnand %p226, %p227
      %p229 = pneg %p228
      // Predicated region
      $region9: #{tpu_custom_call.1} parent=5 // pred_check
        _
      $region10: #{tpu_custom_call.1} parent=5 // pred_check_branch
        %231 = sbr.rel (%p228) target = $region12
      $region11: #{tpu_custom_call.1} parent=5 // pred_region
        %s232 = ssub.s32 %s19, 1
        // Predicated region
        $region13: #{tpu_custom_call.1} parent=11 // pred_check
          %p233 = pneg %p52
        $region14: #{tpu_custom_call.1} parent=11 // pred_check_branch
          %235 = sbr.rel (%p233) target = $region16
        $region15: #{tpu_custom_call.1} parent=11 // pred_region
          %s237 = ssub.s32 128, 128
          %238 = vsyncadd [#allocation3], %s237
          %s239 = sshll.u32 [#allocation2], 4
          %s240 = int_to_ptr.vmem [resolvable:$true] %s239
          %245 = dma.hbm_to_vmem [thread:$0]  %s0, 128, %s240, [#allocation3], 64, 64, 4
        $region16: #{tpu_custom_call.1} parent=11 // pred_fallthru
          _
        // Predicated region
        $region17: #{tpu_custom_call.1} parent=11 // pred_check
          %p246 = pneg %p73
        $region18: #{tpu_custom_call.1} parent=11 // pred_check_branch
          %248 = sbr.rel (%p246) target = $region20
        $region19: #{tpu_custom_call.1} parent=11 // pred_region
          _
        $region20: #{tpu_custom_call.1} parent=11 // pred_fallthru
          _
        // Predicated region
        $region21: #{tpu_custom_call.1} parent=11 // pred_check
          %p249 = pneg %p94
        $region22: #{tpu_custom_call.1} parent=11 // pred_check_branch
          %251 = sbr.rel (%p249) target = $region24
        $region23: #{tpu_custom_call.1} parent=11 // pred_region
          _
        $region24: #{tpu_custom_call.1} parent=11 // pred_fallthru
          _
      $region12: #{tpu_custom_call.1} parent=5 // pred_fallthru
        _
      %p252 = scmp.lt.s32.totalorder %s19, 2
      // Predicated region
      $region25: #{tpu_custom_call.1} parent=5 // pred_check
        %p253 = pneg %p252
      $region26: #{tpu_custom_call.1} parent=5 // pred_check_branch
        %255 = sbr.rel (%p253) target = $region28
      $region27: #{tpu_custom_call.1} parent=5 // pred_region
        // Predicated region
        $region29: #{tpu_custom_call.1} parent=27 // pred_check
          %p256 = pneg %p122
        $region30: #{tpu_custom_call.1} parent=27 // pred_check_branch
          %258 = sbr.rel (%p256) target = $region32
        $region31: #{tpu_custom_call.1} parent=27 // pred_region
          %s259 = ssub.s32 %s27, 1
          %p260 = scmp.gt.s32.totalorder %s259, 0
          %s261 = scalar_select %p260, %s259, 0
          %p262 = scmp.lt.s32.totalorder %s26, 1
          %s263 = scalar_select %p262, %s26, 1
          %p264 = scmp.lt.s32.totalorder %s261, 0
          %s265 = scalar_select %p264, %s261, 0
          %s266 = sadd.s32 %s265, %s263
          %s267 = smul.addr %s266, 8
          %s268 = scalar_lea.vmem %s3, %s267
          %s269 = ssub.s32 %s27, 1
          %p270 = scmp.gt.s32.totalorder %s269, 0
          %s271 = scalar_select %p270, %s269, 0
        $region32: #{tpu_custom_call.1} parent=27 // pred_fallthru
          _
        // Predicated region
        $region33: #{tpu_custom_call.1} parent=27 // pred_check
          %p272 = pneg %p150
        $region34: #{tpu_custom_call.1} parent=27 // pred_check_branch
          %274 = sbr.rel (%p272) target = $region36
        $region35: #{tpu_custom_call.1} parent=27 // pred_region
          %p275 = scmp.lt.s32.totalorder %s26, 1
          %s276 = scalar_select %p275, %s26, 1
          %p277 = scmp.lt.s32.totalorder %s27, 0
          %s278 = scalar_select %p277, %s27, 0
          %s279 = sadd.s32 %s278, %s276
          %s280 = smul.addr %s279, 8
          %s281 = scalar_lea.vmem %s4, %s280
        $region36: #{tpu_custom_call.1} parent=27 // pred_fallthru
          _
        // Predicated region
        $region37: #{tpu_custom_call.1} parent=27 // pred_check
          %p282 = pneg %p184
        $region38: #{tpu_custom_call.1} parent=27 // pred_check_branch
          %284 = sbr.rel (%p282) target = $region40
        $region39: #{tpu_custom_call.1} parent=27 // pred_region
          %s285 = sand.u32 %s174, 1
          %s286 = scalar_lea.sflag [#allocation6], %s285
          %s287 = sand.u32 %s174, 1
          %s288 = smul.addr %s287, 8
          %s289 = scalar_lea.vmem [#allocation5], %s288
          %s290 = sadd.s32 %s27, 1
          %p291 = scmp.lt.s32.totalorder %s290, 0
          %s292 = scalar_select %p291, %s290, 0
          %s294 = ssub.s32 128, 128
          %295 = vsyncadd %s286, %s294
          %s296 = sadd.s32 %s292, %s26
          %s297 = smul.addr %s296, 128
          %s298 = scalar_lea.hbm %s5, %s297
          %s300 = sshll.u32 %s289, 4
          %s301 = int_to_ptr.vmem [resolvable:$true] %s300
          %303 = dma.hbm_to_vmem [thread:$0]  %s298, 128, %s301, %s286
        $region40: #{tpu_custom_call.1} parent=27 // pred_fallthru
          _
      $region28: #{tpu_custom_call.1} parent=5 // pred_fallthru
        _
      %p304 = scmp.le.s32.totalorder 1, %s19
      %p305 = scmp.lt.s32.totalorder %s19, 3
      %p306 = pnand %p304, %p305
      %p307 = pneg %p306
      // Predicated region
      $region41: #{tpu_custom_call.1} parent=5 // pred_check
        _
      $region42: #{tpu_custom_call.1} parent=5 // pred_check_branch
        %309 = sbr.rel (%p306) target = $region44
      $region43: #{tpu_custom_call.1} parent=5 // pred_region
        %s310 = ssub.s32 %s19, 1
        // Predicated region
        $region45: #{tpu_custom_call.1} parent=43 // pred_check
          %p311 = pneg %p52
        $region46: #{tpu_custom_call.1} parent=43 // pred_check_branch
          %313 = sbr.rel (%p311) target = $region48
        $region47: #{tpu_custom_call.1} parent=43 // pred_region
          %314 = dma.done [#allocation3], 128
        $region48: #{tpu_custom_call.1} parent=43 // pred_fallthru
          _
        %s315 = sand.u32 %s177, 1
        %s316 = scalar_lea.sflag [#allocation6], %s315
        %s317 = sand.u32 %s177, 1
        %s318 = smul.addr %s317, 8
        %s319 = scalar_lea.vmem [#allocation5], %s318
        // Predicated region
        $region49: #{tpu_custom_call.1} parent=43 // pred_check
          %p320 = pneg %p190
        $region50: #{tpu_custom_call.1} parent=43 // pred_check_branch
          %322 = sbr.rel (%p320) target = $region52
        $region51: #{tpu_custom_call.1} parent=43 // pred_region
          %323 = dma.done %s316, 128
        $region52: #{tpu_custom_call.1} parent=43 // pred_fallthru
          _
        %p324 = pneg %p52
        %p325 = pneg %p49
        %p326 = pneg %p73
        %p327 = pneg %p70
        %p328 = pneg %p94
        %p329 = pneg %p91
        %s330 = ssub.s32 %s29, 1
        %p331 = scmp.gt.s32.totalorder %s330, 0
        %s332 = scalar_select %p331, %s330, 0
        %p333 = scmp.lt.s32.totalorder %s28, 1
        %s334 = scalar_select %p333, %s28, 1
        %p335 = scmp.lt.s32.totalorder %s332, 0
        %s336 = scalar_select %p335, %s332, 0
        %s337 = sadd.s32 %s336, %s334
        %s338 = smul.addr %s337, 8
        %s339 = scalar_lea.vmem %s3, %s338
        %p340 = pneg %p128
        %p341 = pneg %p125
        %p342 = scmp.lt.s32.totalorder %s28, 1
        %s343 = scalar_select %p342, %s28, 1
        %p344 = scmp.lt.s32.totalorder %s29, 0
        %s345 = scalar_select %p344, %s29, 0
        %s346 = sadd.s32 %s345, %s343
        %s347 = smul.addr %s346, 8
        %s348 = scalar_lea.vmem %s4, %s347
        %p349 = pneg %p156
        %p350 = pneg %p153
        %s351 = sand.u32 %s177, 1
        %s352 = scalar_lea.sflag [#allocation6], %s351
        %s353 = sand.u32 %s177, 1
        %s354 = smul.addr %s353, 8
        %s355 = scalar_lea.vmem [#allocation5], %s354
        %p356 = pneg %p190
        %p357 = pneg %p187
        %p358 = pneg %p218
        %p359 = pneg %p215
        %s360 = sand.u32 %s205, 1
        %s361 = scalar_lea.sflag [#allocation4], %s360
        %s362 = sand.u32 %s205, 1
        %s363 = smul.addr %s362, 8
        %s364 = scalar_lea.vmem [#allocation7], %s363
        %s365 = ssub.s32 %s29, 1
        %p366 = scmp.gt.s32.totalorder %s365, 0
        %s367 = scalar_select %p366, %s365, 0
        %p368 = scmp.lt.s32.totalorder %s28, 1
        %s369 = scalar_select %p368, %s28, 1
        %p370 = scmp.lt.s32.totalorder %s367, 0
        %s371 = scalar_select %p370, %s367, 0
        %s372 = sadd.s32 %s371, %s369
        %s373 = smul.addr %s372, 8
        %s374 = scalar_lea.vmem %s3, %s373
        %s375 = ssub.s32 %s29, 1
        %p376 = scmp.gt.s32.totalorder %s375, 0
        %s377 = scalar_select %p376, %s375, 0
        %p378 = scmp.lt.s32.totalorder %s28, 1
        %s379 = scalar_select %p378, %s28, 1
        %p380 = scmp.lt.s32.totalorder %s29, 0
        %s381 = scalar_select %p380, %s29, 0
        %s382 = sadd.s32 %s381, %s379
        %s383 = smul.addr %s382, 8
        %s384 = scalar_lea.vmem %s4, %s383
        %s385 = sadd.s32 %s29, 1
        %p386 = scmp.lt.s32.totalorder %s385, 0
        %s387 = scalar_select %p386, %s385, 0
        %v389 = vld [vmem:[%s384] sm:$0xff]
        %v390 = vld [vmem:[%s374] sm:$0xff]
        %p391 = scmp.gt.s32.totalorder %s29, 0
        %s392 = scalar_select %p391, 1, 0
        %s393 = scvt.s32.f32 %s392
        %v394 = vstv %s393
        %v395 = vmul.f32 %v390, %v394
        %v396 = vld [vmem:[%s319] sm:$0xff]
        %p397 = scmp.lt.s32.totalorder %s29, 0
        %s398 = scalar_select %p397, 1, 0
        %s399 = scvt.s32.f32 %s398
        %v400 = vstv %s399
        %v401 = vmul.f32 %v396, %v400
        %403 = vrot.lane.b32.xlu0 %v395, 114
        %v404 = vpop.permute.xlu0 %403
        %407 = vrot.lane.b32.xlu0 %v389, 2
        %v408 = vpop.permute.xlu0 %407
        %411 = vrot.lane.b32.xlu0 %v401, 18
        %v412 = vpop.permute.xlu0 %411
        %vm414 = vcmask 15360
        %v415 = vsel %vm414, %v404, %v408
        %vm416 = vcmask 146432
        %v417 = vsel %vm416, %v415, %v412
        %419 = vrot.lane.b32.xlu0 %v417, 127
        %v420 = vpop.permute.xlu0 %419
        %422 = vrot.lane.b32.xlu0 %v417, 126
        %v423 = vpop.permute.xlu0 %422
        %425 = vrot.lane.b32.xlu0 %v417, 125
        %v426 = vpop.permute.xlu0 %425
        %428 = vrot.lane.b32.xlu0 %v417, 124
        %v429 = vpop.permute.xlu0 %428
        %v431 = vld [vmem:[#allocation2] sm:$0xf]
        %v432 = vld [vmem:[#allocation2 + $0x4] sm:$0xf]
        %v433 = vpack.c.bf16 %v420, %v417
        %v434 = vpack.c.bf16 %v426, %v423
        %v435 = vpack.c.bf16 %v429, %v429
        %v438 = vunpack.c.l.b16 %v431
        %v439 = vunpack.c.l.b16 %v432
        %v440 = vpack.c.b16 %v439, %v438
        %vm441 = vcmask 326656
        %v443 = vsel %vm441, %v440, 0
        %vm445 = vcmask 1043456
        %v447 = vsel %vm445, %v435, 0
        %449 = vmatprep.subr.bf16.mxu0 0
        %450 = vmatpush1.bf16.msra.mxu0 0
        %451 = vmatprep.subr.bf16.mxu0 0
        %452 = vmatpush1.bf16.msra.mxu0 0
        %453 = vmatprep.subr.bf16.mxu0 0
        %454 = vmatpush1.bf16.msra.mxu0 0
        %455 = vmatprep.subr.bf16.mxu0 0
        %456 = vmatpush1.bf16.msra.mxu0 0
        %457 = vmatprep.subr.bf16.mxu0 0
        %458 = vmatpush1.bf16.msra.mxu0 0
        %459 = vmatprep.subr.bf16.mxu0 0
        %460 = vmatpush1.bf16.msra.mxu0 %v447
        %461 = vmatprep.subr.bf16.mxu0 0
        %462 = vmatpush1.bf16.msra.mxu0 %v434
        %463 = vmatprep.subr.bf16.mxu0 0
        %464 = vmatpush1.bf16.msra.mxu0 %v433
        %465 = vmatprep.subr.bf16.mxu0 0
        %466 = vmatpush2.bf16.msra.mxu0 0
        %467 = vmatprep.subr.bf16.mxu0 0
        %468 = vmatpush2.bf16.msra.mxu0 0
        %469 = vmatprep.subr.bf16.mxu0 0
        %470 = vmatpush2.bf16.msra.mxu0 0
        %471 = vmatprep.subr.bf16.mxu0 0
        %472 = vmatpush2.bf16.msra.mxu0 0
        %473 = vmatprep.subr.bf16.mxu0 0
        %474 = vmatpush2.bf16.msra.mxu0 0
        %475 = vmatprep.subr.bf16.mxu0 0
        %476 = vmatpush2.bf16.msra.mxu0 0
        %477 = vmatprep.subr.bf16.mxu0 0
        %478 = vmatpush2.bf16.msra.mxu0 0
        %479 = vmatprep.subr.bf16.mxu0 0
        %480 = vmatpush2.bf16.msra.mxu0 0
        %481 = vmatprep.mubr.bf16.mxu0 0
        %482 = vmatmul.mubr.bf16.gmra.mxu0 %v443
        %v483 = vpop.f32.mrf.mxu0
        %v484 = vadd.f32 0.0, %v483
        %v485 = vpop.f32.mrf.mxu0
        %v486 = vpop.f32.mrf.mxu0
        %v487 = vadd.f32 0.0, %v486
        %v488 = vpop.f32.mrf.mxu0
        %489 = vdwg.mxu0
        %v490 = vld [vmem:[%s1] sm:$0xff]
        %v491 = vld [vmem:[%s1 + $0x8] sm:$0xff]
        %493 = vset.pattern.permute.xlu0 0
        %494 = vperm.xlu0 %493, %v490
        %v495 = vpop.permute.xlu0 %494
        %498 = vset.pattern.permute.xlu0 0
        %499 = vperm.xlu0 %498, %v491
        %v500 = vpop.permute.xlu0 %499
        %v502 = vmul.f32 %v484, %v495
        %v503 = vmul.f32 %v487, %v500
        %v504 = vld [vmem:[%s2] sm:$0xff]
        %v505 = vld [vmem:[%s2 + $0x8] sm:$0xff]
        %507 = vset.pattern.permute.xlu0 0
        %508 = vperm.xlu0 %507, %v504
        %v509 = vpop.permute.xlu0 %508
        %512 = vset.pattern.permute.xlu0 0
        %513 = vperm.xlu0 %512, %v505
        %v514 = vpop.permute.xlu0 %513
        %v516 = vadd.f32 %v502, %v509
        %v517 = vadd.f32 %v503, %v514
        %v518 = vtanh.pop %v516
        %v519 = vtanh.pop %v517
        %v520 = vpack.c.bf16 %v519, %v518
        %v522 = vunpack.c.l.b16 %v520
        %v523 = vunpack.c.h.b16 %v520
        %v524 = vpack.c.b16 %v522, %v522
        %v525 = vpack.c.b16 %v523, %v523
        %vm528 = vcmask 125952
        %529 = vst.msk [vmem:[%s364] sm:$0xf] %vm528, %v524
        %530 = vst.msk [vmem:[%s364 + $0x4] sm:$0xf] %vm528, %v525
        %s531 = sand.u32 %s205, 1
        %s532 = scalar_lea.sflag [#allocation4], %s531
        %s533 = sand.u32 %s205, 1
        %s534 = smul.addr %s533, 8
        %s535 = scalar_lea.vmem [#allocation7], %s534
        // Predicated region
        $region53: #{tpu_custom_call.1} parent=43 // pred_check
          %p536 = pneg %p215
        $region54: #{tpu_custom_call.1} parent=43 // pred_check_branch
          %538 = sbr.rel (%p536) target = $region56
        $region55: #{tpu_custom_call.1} parent=43 // pred_region
          %s540 = ssub.s32 128, 128
          %541 = vsyncadd %s532, %s540
          %s542 = smul.addr %s28, 2
          %s543 = sadd.s32 %s29, %s542
          %s544 = smul.addr %s543, 64
          %s545 = scalar_lea.hbm %s6, %s544
          %s546 = sshll.u32 %s535, 4
          %s547 = int_to_ptr.vmem [resolvable:$true] %s546
          %552 = dma.vmem_to_hbm [thread:$0]  %s547, 128, %s545, %s532, 64, 64, 4
        $region56: #{tpu_custom_call.1} parent=43 // pred_fallthru
          _
      $region44: #{tpu_custom_call.1} parent=5 // pred_fallthru
        _
      %p553 = scmp.le.s32.totalorder 2, %s19
      // Predicated region
      $region57: #{tpu_custom_call.1} parent=5 // pred_check
        %p554 = pneg %p553
      $region58: #{tpu_custom_call.1} parent=5 // pred_check_branch
        %556 = sbr.rel (%p554) target = $region60
      $region59: #{tpu_custom_call.1} parent=5 // pred_region
        %s557 = ssub.s32 %s19, 2
        // Predicated region
        $region61: #{tpu_custom_call.1} parent=59 // pred_check
          %p558 = pneg %p221
        $region62: #{tpu_custom_call.1} parent=59 // pred_check_branch
          %560 = sbr.rel (%p558) target = $region64
        $region63: #{tpu_custom_call.1} parent=59 // pred_region
          %s561 = sand.u32 %s206, 1
          %s562 = scalar_lea.sflag [#allocation4], %s561
          %s563 = sand.u32 %s206, 1
          %s564 = smul.addr %s563, 8
          %s565 = scalar_lea.vmem [#allocation7], %s564
          %566 = dma.done %s562, 128
        $region64: #{tpu_custom_call.1} parent=59 // pred_fallthru
          _
      $region60: #{tpu_custom_call.1} parent=5 // pred_fallthru
        _
    $region6: #{tpu_custom_call.1} parent=1 // loop_footer
      %s23 = sadd.s32 1, %s19
    $region7: #{tpu_custom_call.1} parent=1 // loop_footer_branch
      %18 = sbr.rel target = $region3
    $region8: #{tpu_custom_call.1} parent=1 // loop_exit
      _
    %567 = vsyncpa [#allocation3], 1
    %s568 = scalar_lea.sflag [#allocation3], 1
    %569 = vsyncpa %s568, 1
    %570 = vsyncpa [#allocation6], 1
    %s571 = scalar_lea.sflag [#allocation6], 1
    %572 = vsyncpa %s571, 1
    %573 = vsyncpa [#allocation4], 1
    %s574 = scalar_lea.sflag [#allocation4], 1
    %575 = vsyncpa %s574, 1

</llo_original>
